<compile_context>
chip_gen: v5e
topology: v5e:2x2
jax: 0.10.0
libtpu: 0.0.40
codegen_flags: <defaults>
</compile_context>

<pallas_src>
import jax
import jax.numpy as jnp
from jax.experimental import pallas as pl
from jax.experimental.pallas import tpu as pltpu


# ---------------------------------------------------------------------------
# Pallas kernel: fused same-padding Conv1d(c_in -> 1, bias=False) + sigmoid
# ---------------------------------------------------------------------------
def equalizer_conv_kernel(w_ref, x_ref, o_ref):
    # w_ref : SMEM (c_in*K,)   flattened Conv1d taps, row-major (c, k)
    # x_ref : VMEM (BB, c_in, L) block of BB examples
    # o_ref : VMEM (BB, L)     lane-dense sigmoid(conv) output
    bb, c_in, L = x_ref.shape
    K = w_ref.shape[0] // c_in
    pad = K // 2

    acc = jnp.zeros((bb, L), jnp.float32)
    zpad = jnp.zeros((bb, pad), jnp.float32) if pad else None
    for c in range(c_in):                        # static unroll: c_in in {1, 2}
        xc = x_ref[:, c, :]                      # (BB, L) — one channel, full lanes
        if pad:
            xcp = jnp.concatenate([zpad, xc, zpad], axis=1)  # (BB, L + 2*pad)
        else:
            xcp = xc
        for k in range(K):                       # static unroll over taps
            acc = acc + w_ref[c * K + k] * xcp[:, k:k + L]   # scalar * (BB, L) VPU FMA

    o_ref[...] = 1.0 / (1.0 + jnp.exp(-acc))     # fused sigmoid (exp on EUP)


# ---------------------------------------------------------------------------
# wrapper
# ---------------------------------------------------------------------------
def equalizer_conv_forward(x, weight, *, block_b=8):
    """sigmoid(Conv1d(c_in->1, K, padding=K//2, bias=False)(x)), x: (N, c_in, L)."""
    n, c_in, L = x.shape
    out_c, w_cin, K = weight.shape
    assert out_c == 1 and w_cin == c_in
    assert K % 2 == 1, "same-length output requires an odd eq_kernel_size"

    x = x.astype(jnp.float32)                    # module does I_f.float()
    w_flat = weight.reshape(c_in * K).astype(jnp.float32)  # packed taps -> SMEM

    # pad the batch so every grid block is a full 8-sublane group
    n_pad = pl.cdiv(n, block_b) * block_b
    if n_pad != n:
        x = jnp.concatenate(
            [x, jnp.zeros((n_pad - n, c_in, L), jnp.float32)], axis=0)

    out = pl.pallas_call(
        equalizer_conv_kernel,
        out_shape=jax.ShapeDtypeStruct((n_pad, L), jnp.float32),
        grid=(n_pad // block_b,),
        in_specs=[
            pl.BlockSpec(memory_space=pltpu.MemorySpace.SMEM),       # packed taps
            pl.BlockSpec((block_b, c_in, L), lambda i: (i, 0, 0)),   # batch block
        ],
        out_specs=pl.BlockSpec((block_b, L), lambda i: (i, 0)),      # lane-dense slab
        compiler_params=pltpu.CompilerParams(
            dimension_semantics=("parallel",)),                      # v7x: 2 TCs
    )(w_flat, x)

    # re-insert the out_channels=1 axis in the wrapper (layout plumbing only)
    return out[:n].reshape(n, 1, L)


# ---------------------------------------------------------------------------
# demo / self-check
# ---------------------------------------------------------------------------
if __name__ == "__main__":
    key = jax.random.PRNGKey(0)
    kx, kw = jax.random.split(key)

    # prior='slc' -> c_in=2; 128 frequency bins (matches the module's num_freq_steps);
    # eq_kernel_size=5; batch=16 -> two 8-example grid blocks.
    N, C_IN, L, K = 16, 2, 128, 5
    x = jax.random.normal(kx, (N, C_IN, L), jnp.float32)
    weight = jax.random.normal(kw, (1, C_IN, K), jnp.float32) * 0.3  # Conv1d weight, bias=False

    out = equalizer_conv_forward(x, weight, block_b=8)
    out = jax.block_until_ready(out)

    # independent pure-JAX reference: XLA conv (cross-correlation, like torch) + sigmoid
    ref = jax.nn.sigmoid(jax.lax.conv_general_dilated(
        x, weight, window_strides=(1,), padding=[(K // 2, K // 2)],
        dimension_numbers=("NCH", "OIH", "NCH"),
        precision=jax.lax.Precision.HIGHEST))

    assert out.shape == (N, 1, L), out.shape
    assert jnp.allclose(out, ref, atol=1e-5, rtol=1e-5), \
        float(jnp.max(jnp.abs(out - ref)))
    print("KERNEL_OK")
</pallas_src>

<mosaic_0001>
module attributes {stable_mosaic.version = 11 : i64} {
  func.func @equalizer_conv_kernel(%arg0: i32, %arg1: memref<10xf32, #tpu.memory_space<smem>>, %arg2: memref<8x2x128xf32, #tpu.memory_space<vmem>>, %arg3: memref<8x128xf32, #tpu.memory_space<vmem>>) attributes {dimension_semantics = [#tpu.dimension_semantics<parallel>], iteration_bounds = array<i64: 2>, scalar_prefetch = 0 : i64, scratch_operands = 0 : i64, tpu.core_type = #tpu.core_type<tc>, window_params = [{transform_indices = @transform_0, window_bounds = array<i64: 10>}, {transform_indices = @transform_1, window_bounds = array<i64: 8, 2, 128>}, {transform_indices = @transform_2, window_bounds = array<i64: 8, 128>}]} {
    %cst = arith.constant 0.000000e+00 : f32
    %0 = vector.broadcast %cst : f32 to vector<8x128xf32>
    %cst_0 = arith.constant 0.000000e+00 : f32
    %1 = vector.broadcast %cst_0 : f32 to vector<8x2xf32>
    %c0 = arith.constant 0 : index
    %c0_1 = arith.constant 0 : index
    %c0_2 = arith.constant 0 : index
    %2 = vector.load %arg2[%c0, %c0_1, %c0_2] : memref<8x2x128xf32, #tpu.memory_space<vmem>>, vector<8x1x128xf32>
    %3 = vector.shape_cast %2 : vector<8x1x128xf32> to vector<8x128xf32>
    %4 = tpu.concatenate %1, %3, %1 in 1 : vector<8x2xf32>, vector<8x128xf32>, vector<8x2xf32> -> vector<8x132xf32>
    %c0_3 = arith.constant 0 : index
    %5 = memref.load %arg1[%c0_3] : memref<10xf32, #tpu.memory_space<smem>>
    %6 = vector.extract_strided_slice %4 {offsets = [0, 0], sizes = [8, 128], strides = [1, 1]} : vector<8x132xf32> to vector<8x128xf32>
    %7 = vector.broadcast %5 : f32 to vector<8x128xf32>
    %8 = arith.mulf %7, %6 : vector<8x128xf32>
    %9 = arith.addf %0, %8 : vector<8x128xf32>
    %c1 = arith.constant 1 : index
    %10 = memref.load %arg1[%c1] : memref<10xf32, #tpu.memory_space<smem>>
    %11 = vector.extract_strided_slice %4 {offsets = [0, 1], sizes = [8, 128], strides = [1, 1]} : vector<8x132xf32> to vector<8x128xf32>
    %12 = vector.broadcast %10 : f32 to vector<8x128xf32>
    %13 = arith.mulf %12, %11 : vector<8x128xf32>
    %14 = arith.addf %9, %13 : vector<8x128xf32>
    %c2 = arith.constant 2 : index
    %15 = memref.load %arg1[%c2] : memref<10xf32, #tpu.memory_space<smem>>
    %16 = vector.extract_strided_slice %4 {offsets = [0, 2], sizes = [8, 128], strides = [1, 1]} : vector<8x132xf32> to vector<8x128xf32>
    %17 = vector.broadcast %15 : f32 to vector<8x128xf32>
    %18 = arith.mulf %17, %16 : vector<8x128xf32>
    %19 = arith.addf %14, %18 : vector<8x128xf32>
    %c3 = arith.constant 3 : index
    %20 = memref.load %arg1[%c3] : memref<10xf32, #tpu.memory_space<smem>>
    %21 = vector.extract_strided_slice %4 {offsets = [0, 3], sizes = [8, 128], strides = [1, 1]} : vector<8x132xf32> to vector<8x128xf32>
    %22 = vector.broadcast %20 : f32 to vector<8x128xf32>
    %23 = arith.mulf %22, %21 : vector<8x128xf32>
    %24 = arith.addf %19, %23 : vector<8x128xf32>
    %c4 = arith.constant 4 : index
    %25 = memref.load %arg1[%c4] : memref<10xf32, #tpu.memory_space<smem>>
    %26 = vector.extract_strided_slice %4 {offsets = [0, 4], sizes = [8, 128], strides = [1, 1]} : vector<8x132xf32> to vector<8x128xf32>
    %27 = vector.broadcast %25 : f32 to vector<8x128xf32>
    %28 = arith.mulf %27, %26 : vector<8x128xf32>
    %29 = arith.addf %24, %28 : vector<8x128xf32>
    %c0_4 = arith.constant 0 : index
    %c1_5 = arith.constant 1 : index
    %c0_6 = arith.constant 0 : index
    %30 = vector.load %arg2[%c0_4, %c1_5, %c0_6] : memref<8x2x128xf32, #tpu.memory_space<vmem>>, vector<8x1x128xf32>
    %31 = vector.shape_cast %30 : vector<8x1x128xf32> to vector<8x128xf32>
    %32 = tpu.concatenate %1, %31, %1 in 1 : vector<8x2xf32>, vector<8x128xf32>, vector<8x2xf32> -> vector<8x132xf32>
    %c5 = arith.constant 5 : index
    %33 = memref.load %arg1[%c5] : memref<10xf32, #tpu.memory_space<smem>>
    %34 = vector.extract_strided_slice %32 {offsets = [0, 0], sizes = [8, 128], strides = [1, 1]} : vector<8x132xf32> to vector<8x128xf32>
    %35 = vector.broadcast %33 : f32 to vector<8x128xf32>
    %36 = arith.mulf %35, %34 : vector<8x128xf32>
    %37 = arith.addf %29, %36 : vector<8x128xf32>
    %c6 = arith.constant 6 : index
    %38 = memref.load %arg1[%c6] : memref<10xf32, #tpu.memory_space<smem>>
    %39 = vector.extract_strided_slice %32 {offsets = [0, 1], sizes = [8, 128], strides = [1, 1]} : vector<8x132xf32> to vector<8x128xf32>
    %40 = vector.broadcast %38 : f32 to vector<8x128xf32>
    %41 = arith.mulf %40, %39 : vector<8x128xf32>
    %42 = arith.addf %37, %41 : vector<8x128xf32>
    %c7 = arith.constant 7 : index
    %43 = memref.load %arg1[%c7] : memref<10xf32, #tpu.memory_space<smem>>
    %44 = vector.extract_strided_slice %32 {offsets = [0, 2], sizes = [8, 128], strides = [1, 1]} : vector<8x132xf32> to vector<8x128xf32>
    %45 = vector.broadcast %43 : f32 to vector<8x128xf32>
    %46 = arith.mulf %45, %44 : vector<8x128xf32>
    %47 = arith.addf %42, %46 : vector<8x128xf32>
    %c8 = arith.constant 8 : index
    %48 = memref.load %arg1[%c8] : memref<10xf32, #tpu.memory_space<smem>>
    %49 = vector.extract_strided_slice %32 {offsets = [0, 3], sizes = [8, 128], strides = [1, 1]} : vector<8x132xf32> to vector<8x128xf32>
    %50 = vector.broadcast %48 : f32 to vector<8x128xf32>
    %51 = arith.mulf %50, %49 : vector<8x128xf32>
    %52 = arith.addf %47, %51 : vector<8x128xf32>
    %c9 = arith.constant 9 : index
    %53 = memref.load %arg1[%c9] : memref<10xf32, #tpu.memory_space<smem>>
    %54 = vector.extract_strided_slice %32 {offsets = [0, 4], sizes = [8, 128], strides = [1, 1]} : vector<8x132xf32> to vector<8x128xf32>
    %55 = vector.broadcast %53 : f32 to vector<8x128xf32>
    %56 = arith.mulf %55, %54 : vector<8x128xf32>
    %57 = arith.addf %52, %56 : vector<8x128xf32>
    %cst_7 = arith.constant 0.000000e+00 : f32
    %58 = vector.broadcast %cst_7 : f32 to vector<8x128xf32>
    %59 = arith.subf %58, %57 : vector<8x128xf32>
    %60 = math.exp %59 : vector<8x128xf32>
    %cst_8 = arith.constant 1.000000e+00 : f32
    %61 = vector.broadcast %cst_8 : f32 to vector<8x128xf32>
    %62 = arith.addf %61, %60 : vector<8x128xf32>
    %cst_9 = arith.constant 1.000000e+00 : f32
    %63 = vector.broadcast %cst_9 : f32 to vector<8x128xf32>
    %64 = arith.divf %63, %62 : vector<8x128xf32>
    %c0_10 = arith.constant 0 : index
    %c0_11 = arith.constant 0 : index
    %65 = vector.load %arg3[%c0_10, %c0_11] : memref<8x128xf32, #tpu.memory_space<vmem>>, vector<8x128xf32>
    tpu.vector_store %arg3[%c0_10, %c0_11], %64 {strides = array<i32>} : memref<8x128xf32, #tpu.memory_space<vmem>>, vector<8x128xf32>,
    return
  }
  func.func @transform_0(%arg0: i32) -> i32 {
    %c0_i32 = arith.constant 0 : i32
    %c0_i32_0 = arith.constant 0 : i32
    return %c0_i32 : i32
  }
  func.func @transform_1(%arg0: i32) -> (i32, i32, i32) {
    %c0_i32 = arith.constant 0 : i32
    %c0_i32_0 = arith.constant 0 : i32
    %c0_i32_1 = arith.constant 0 : i32
    return %arg0, %c0_i32, %c0_i32_0 : i32, i32, i32
  }
  func.func @transform_2(%arg0: i32) -> (i32, i32) {
    %c0_i32 = arith.constant 0 : i32
    %c0_i32_0 = arith.constant 0 : i32
    return %arg0, %c0_i32 : i32, i32
  }
}

</mosaic_0001>

<llo_original>
// kernel: tpu_custom_call.1
$region0: #{tpu_custom_call.1}
  #allocation0 [shape = 'u32[]', space=smem, size = 0x4, offset = 0x4, fixed_abs, tag = 'smem constant byte address 0x4 - core index']
  #allocation1 [shape = 'u32[72,128]{1,0:T(1,128)}', space=vmem, size = 0x9000, scoped, tag = 'internal scratch']
  %s0 = inlined_call_operand.hbm [shape: f32[10], index: 0, kind: input, shape index: {}]
  %s1 = inlined_call_operand.hbm [shape: f32[16,2,128], index: 1, kind: input, shape index: {}]
  %s2 = inlined_call_operand.hbm [shape: f32[16,128], index: 2, kind: output, shape index: {}]
  %s3 = sld [smem:[#allocation0]]
  $region49: #{tpu_custom_call.1} parent=0
    _
  %s5 = ssub.s32 1, %s3
  %s6 = scalar_select 0, %s5, %s3
  $region1: #{tpu_custom_call.1} parent=0
    #allocation2 [shape = 'u8[512]{0}', space=smem, size = 0x200, scoped, tag = 'input window, operand 0, single buffered']
    #allocation3 [shape = 's32[2]{0}', space=sflag, size = 0x8, scoped, tag = 'scoped memory for tpu_custom_call.1']
    #allocation4 [shape = 's32[2]{0}', space=sflag, size = 0x8, scoped, tag = 'scoped memory for tpu_custom_call.1']
    #allocation5 [shape = 's32[2]{0}', space=sflag, size = 0x8, scoped, tag = 'scoped memory for tpu_custom_call.1']
    #allocation6 [shape = 'u8[16384]{0}', space=vmem, size = 0x4000, scoped, tag = 'input window, operand 1']
    #allocation7 [shape = 'u8[8192]{0}', space=vmem, size = 0x2000, scoped, tag = 'output window, operand 0']
    %7 = vsyncpa [#allocation5], 0
    %8 = vsyncpa [#allocation3], 0
    %s9 = scalar_lea.sflag [#allocation3], 1
    %10 = vsyncpa %s9, 0
    %11 = vsyncpa [#allocation4], 0
    %s12 = scalar_lea.sflag [#allocation4], 1
    %13 = vsyncpa %s12, 0
    loop: start=0, step=1, limit=4
    $region2: #{tpu_custom_call.1} parent=1 // loop_pre_header
      _
    $region3: #{tpu_custom_call.1} parent=1 // loop_header
      %s15 = sphi 0, %s19
      %p16 = scmp.ge.s32.totalorder %s15, 4
      %s23 = sphi 0, %s23
      %s25 = sphi 0, %s23
      %s26 = sphi 0, %s25
      %s40 = sphi 0, %s26
      %s46 = sphi 0, %s48
      %s49 = sphi 0, %s46
      %s50 = sphi 0, %s49
      %s66 = sphi 0, %s50
      %s72 = sphi 0, %s74
      %s75 = sphi 0, %s72
      %s76 = sphi 0, %s75
      %s92 = sphi 0, %s76
    $region4: #{tpu_custom_call.1} parent=1 // loop_header_branch
      %18 = sbr.rel (%p16) target = $region8
    $region5: #{tpu_custom_call.1} parent=1 // loop_body
      %s20 = ssub.s32 %s15, 1
      %s21 = ssub.s32 %s15, 2
      %s22 = sadd.s32 %s15, 1
      %s24 = sadd.s32 %s23, 1
      %p27 = scmp.eq.s32.totalorder %s15, 1
      %p28 = scmp.ne.s32.totalorder %s23, %s25
      %p29 = scmp.eq.s32.totalorder %s15, 0
      %p30 = por %p28, %p29
      %p31 = scmp.ne.s32.totalorder %s23, %s25
      %p32 = scmp.eq.s32.totalorder %s20, 1
      %p33 = por %p31, %p32
      %p34 = scmp.ne.s32.totalorder %s25, %s26
      %p35 = scmp.eq.s32.totalorder %s20, 0
      %p36 = por %p34, %p35
      %p37 = scmp.ne.s32.totalorder %s25, %s26
      %p38 = scmp.eq.s32.totalorder %s21, 1
      %p39 = por %p37, %p38
      %p41 = scmp.ne.s32.totalorder %s26, %s40
      %p42 = scmp.eq.s32.totalorder %s21, 0
      %p43 = por %p41, %p42
      %s44 = ssub.s32 %s15, %s22
      %p45 = scmp.eq.s32.totalorder %s44, 0
      %s47 = sadd.s32 %s46, 1
      %s48 = scalar_select %p45, %s46, %s47
      %p51 = pneg %p45
      %p52 = scmp.eq.s32.totalorder %s15, 1
      %p53 = por %p51, %p52
      %p54 = scmp.ne.s32.totalorder %s46, %s49
      %p55 = scmp.eq.s32.totalorder %s15, 0
      %p56 = por %p54, %p55
      %p57 = scmp.ne.s32.totalorder %s46, %s49
      %p58 = scmp.eq.s32.totalorder %s20, 1
      %p59 = por %p57, %p58
      %p60 = scmp.ne.s32.totalorder %s49, %s50
      %p61 = scmp.eq.s32.totalorder %s20, 0
      %p62 = por %p60, %p61
      %p63 = scmp.ne.s32.totalorder %s49, %s50
      %p64 = scmp.eq.s32.totalorder %s21, 1
      %p65 = por %p63, %p64
      %p67 = scmp.ne.s32.totalorder %s50, %s66
      %p68 = scmp.eq.s32.totalorder %s21, 0
      %p69 = por %p67, %p68
      %s70 = ssub.s32 %s15, %s22
      %p71 = scmp.eq.s32.totalorder %s70, 0
      %s73 = sadd.s32 %s72, 1
      %s74 = scalar_select %p71, %s72, %s73
      %p77 = pneg %p71
      %p78 = scmp.eq.s32.totalorder %s15, 1
      %p79 = por %p77, %p78
      %p80 = scmp.ne.s32.totalorder %s72, %s75
      %p81 = scmp.eq.s32.totalorder %s15, 0
      %p82 = por %p80, %p81
      %p83 = scmp.ne.s32.totalorder %s72, %s75
      %p84 = scmp.eq.s32.totalorder %s20, 1
      %p85 = por %p83, %p84
      %p86 = scmp.ne.s32.totalorder %s75, %s76
      %p87 = scmp.eq.s32.totalorder %s20, 0
      %p88 = por %p86, %p87
      %p89 = scmp.ne.s32.totalorder %s75, %s76
      %p90 = scmp.eq.s32.totalorder %s21, 1
      %p91 = por %p89, %p90
      %p93 = scmp.ne.s32.totalorder %s76, %s92
      %p94 = scmp.eq.s32.totalorder %s21, 0
      %p95 = por %p93, %p94
      %p96 = scmp.le.s32.totalorder 1, %s15
      %p97 = scmp.lt.s32.totalorder %s15, 3
      %p98 = pnand %p96, %p97
      %p99 = pneg %p98
      // Predicated region
      $region9: #{tpu_custom_call.1} parent=5 // pred_check
        _
      $region10: #{tpu_custom_call.1} parent=5 // pred_check_branch
        %101 = sbr.rel (%p98) target = $region12
      $region11: #{tpu_custom_call.1} parent=5 // pred_region
        %s102 = ssub.s32 %s15, 1
        // Predicated region
        $region13: #{tpu_custom_call.1} parent=11 // pred_check
          %p103 = pneg %p36
        $region14: #{tpu_custom_call.1} parent=11 // pred_check_branch
          %105 = sbr.rel (%p103) target = $region16
        $region15: #{tpu_custom_call.1} parent=11 // pred_region
          %107 = vsyncadd [#allocation5], 0
          %s109 = sshll.u32 %s0, 4
          %s110 = int_to_ptr.hbm [resolvable:$true] %s109
          %112 = dma.hbm_to_smem %s110, 16, [#allocation2], [#allocation5]
        $region16: #{tpu_custom_call.1} parent=11 // pred_fallthru
          _
      $region12: #{tpu_custom_call.1} parent=5 // pred_fallthru
        _
      %p113 = scmp.lt.s32.totalorder %s15, 2
      // Predicated region
      $region17: #{tpu_custom_call.1} parent=5 // pred_check
        %p114 = pneg %p113
      $region18: #{tpu_custom_call.1} parent=5 // pred_check_branch
        %116 = sbr.rel (%p114) target = $region20
      $region19: #{tpu_custom_call.1} parent=5 // pred_region
        // Predicated region
        $region21: #{tpu_custom_call.1} parent=19 // pred_check
          %p117 = pneg %p56
        $region22: #{tpu_custom_call.1} parent=19 // pred_check_branch
          %119 = sbr.rel (%p117) target = $region24
        $region23: #{tpu_custom_call.1} parent=19 // pred_region
          %s120 = sand.u32 %s46, 1
          %s121 = scalar_lea.sflag [#allocation3], %s120
          %s122 = sand.u32 %s46, 1
          %s123 = smul.addr %s122, 16
          %s124 = scalar_lea.vmem [#allocation6], %s123
          %s125 = smul.u32 8, %s15
          %127 = vsyncadd %s121, 0
          %s128 = smul.addr %s125, 2
          %s129 = scalar_lea.hbm %s1, %s128
          %s130 = sshll.u32 %s129, 4
          %s131 = int_to_ptr.hbm [resolvable:$true] %s130
          %s132 = sshll.u32 %s124, 4
          %s133 = int_to_ptr.vmem [resolvable:$true] %s132
          %138 = dma.hbm_to_vmem [thread:$0]  %s131, 256, %s133, %s121, 32, 32, 2
        $region24: #{tpu_custom_call.1} parent=19 // pred_fallthru
          _
      $region20: #{tpu_custom_call.1} parent=5 // pred_fallthru
        _
      %p139 = scmp.le.s32.totalorder 1, %s15
      %p140 = scmp.lt.s32.totalorder %s15, 3
      %p141 = pnand %p139, %p140
      %p142 = pneg %p141
      // Predicated region
      $region25: #{tpu_custom_call.1} parent=5 // pred_check
        _
      $region26: #{tpu_custom_call.1} parent=5 // pred_check_branch
        %144 = sbr.rel (%p141) target = $region28
      $region27: #{tpu_custom_call.1} parent=5 // pred_region
        %s145 = ssub.s32 %s15, 1
        // Predicated region
        $region29: #{tpu_custom_call.1} parent=27 // pred_check
          %p146 = pneg %p36
        $region30: #{tpu_custom_call.1} parent=27 // pred_check_branch
          %148 = sbr.rel (%p146) target = $region32
        $region31: #{tpu_custom_call.1} parent=27 // pred_region
          %150 = dma.done [#allocation5], 16
        $region32: #{tpu_custom_call.1} parent=27 // pred_fallthru
          _
        %s151 = sand.u32 %s49, 1
        %s152 = scalar_lea.sflag [#allocation3], %s151
        %s153 = sand.u32 %s49, 1
        %s154 = smul.addr %s153, 16
        %s155 = scalar_lea.vmem [#allocation6], %s154
        // Predicated region
        $region33: #{tpu_custom_call.1} parent=27 // pred_check
          %p156 = pneg %p62
        $region34: #{tpu_custom_call.1} parent=27 // pred_check_branch
          %158 = sbr.rel (%p156) target = $region36
        $region35: #{tpu_custom_call.1} parent=27 // pred_region
          %160 = dma.done %s152, 256
        $region36: #{tpu_custom_call.1} parent=27 // pred_fallthru
          _
        %161 = sfence
        %p162 = pneg %p36
        %p163 = pneg %p33
        %s164 = sand.u32 %s49, 1
        %s165 = scalar_lea.sflag [#allocation3], %s164
        %s166 = sand.u32 %s49, 1
        %s167 = smul.addr %s166, 16
        %s168 = scalar_lea.vmem [#allocation6], %s167
        %p169 = pneg %p62
        %p170 = pneg %p59
        %p171 = pneg %p88
        %p172 = pneg %p85
        %s173 = sand.u32 %s75, 1
        %s174 = scalar_lea.sflag [#allocation4], %s173
        %s175 = sand.u32 %s75, 1
        %s176 = smul.addr %s175, 8
        %s177 = scalar_lea.vmem [#allocation7], %s176
        %s178 = smul.u32 8, %s20
        %v179 = vld [vmem:[%s155] sm:$0x1]
        %v180 = vld [vmem:[%s155 + $0x2] sm:$0x1]
        %v181 = vld [vmem:[%s155 + $0x4] sm:$0x1]
        %v182 = vld [vmem:[%s155 + $0x6] sm:$0x1]
        %v183 = vld [vmem:[%s155 + $0x8] sm:$0x1]
        %v184 = vld [vmem:[%s155 + $0xa] sm:$0x1]
        %v185 = vld [vmem:[%s155 + $0xc] sm:$0x1]
        %v186 = vld [vmem:[%s155 + $0xe] sm:$0x1]
        %v195 = vrot.slane %v180, 7
        %vm196 = vcmask 1041409
        %v197 = vsel %vm196, %v195, %v179
        %v198 = vrot.slane %v181, 6
        %vm199 = vcmask 1042434
        %v200 = vsel %vm199, %v198, %v197
        %v201 = vrot.slane %v182, 5
        %vm202 = vcmask 1043459
        %v203 = vsel %vm202, %v201, %v200
        %v204 = vrot.slane %v183, 4
        %vm205 = vcmask 1044484
        %v206 = vsel %vm205, %v204, %v203
        %v207 = vrot.slane %v184, 3
        %vm208 = vcmask 1045509
        %v209 = vsel %vm208, %v207, %v206
        %v210 = vrot.slane %v185, 2
        %vm211 = vcmask 1046534
        %v212 = vsel %vm211, %v210, %v209
        %v213 = vrot.slane %v186, 1
        %vm214 = vcmask 1047559
        %v215 = vsel %vm214, %v213, %v212
        %216 = vrot.lane.b32.xlu0 %v215, 2
        %v217 = vpop.permute.xlu0 %216
        %vm219 = vcmask 15360
        %v220 = vsel %vm219, 0.0, %v217
        %v221 = vsel %vm219, %v217, 0.0
        %s222 = sld [smem:[#allocation2]]
        %v223 = vstv %s222
        %v224 = vmul.f32 %v223, %v220
        %v225 = vadd.f32 %v224, 0.0
        %s226 = sld [smem:[#allocation2 + $0x1]]
        %v227 = vstv %s226
        %v228 = vmul.f32 %v227, %v220
        %v229 = vmul.f32 %v227, %v221
        %232 = vrot.lane.b32.xlu0 %v228, 127
        %v233 = vpop.permute.xlu0 %232
        %234 = vrot.lane.b32.xlu0 %v229, 127
        %v235 = vpop.permute.xlu0 %234
        %vm236 = vcmask 1039360
        %v237 = vsel %vm236, %v233, %v235
        %v239 = vadd.f32 %v225, %v237
        %s240 = sld [smem:[#allocation2 + $0x2]]
        %v241 = vstv %s240
        %v242 = vmul.f32 %v241, %v220
        %v243 = vmul.f32 %v241, %v221
        %246 = vrot.lane.b32.xlu0 %v242, 126
        %v247 = vpop.permute.xlu0 %246
        %248 = vrot.lane.b32.xlu0 %v243, 126
        %v249 = vpop.permute.xlu0 %248
        %vm250 = vcmask 1031168
        %v251 = vsel %vm250, %v247, %v249
        %v253 = vadd.f32 %v239, %v251
        %s254 = sld [smem:[#allocation2 + $0x3]]
        %v255 = vstv %s254
        %v256 = vmul.f32 %v255, %v220
        %v257 = vmul.f32 %v255, %v221
        %260 = vrot.lane.b32.xlu0 %v256, 125
        %v261 = vpop.permute.xlu0 %260
        %262 = vrot.lane.b32.xlu0 %v257, 125
        %v263 = vpop.permute.xlu0 %262
        %vm264 = vcmask 1022976
        %v265 = vsel %vm264, %v261, %v263
        %v267 = vadd.f32 %v253, %v265
        %s268 = sld [smem:[#allocation2 + $0x4]]
        %v269 = vstv %s268
        %v270 = vmul.f32 %v269, %v220
        %v271 = vmul.f32 %v269, %v221
        %274 = vrot.lane.b32.xlu0 %v270, 124
        %v275 = vpop.permute.xlu0 %274
        %276 = vrot.lane.b32.xlu0 %v271, 124
        %v277 = vpop.permute.xlu0 %276
        %vm278 = vcmask 1014784
        %v279 = vsel %vm278, %v275, %v277
        %v281 = vadd.f32 %v267, %v279
        %v282 = vld [vmem:[%s155 + $0x1] sm:$0x1]
        %v283 = vld [vmem:[%s155 + $0x3] sm:$0x1]
        %v284 = vld [vmem:[%s155 + $0x5] sm:$0x1]
        %v285 = vld [vmem:[%s155 + $0x7] sm:$0x1]
        %v286 = vld [vmem:[%s155 + $0x9] sm:$0x1]
        %v287 = vld [vmem:[%s155 + $0xb] sm:$0x1]
        %v288 = vld [vmem:[%s155 + $0xd] sm:$0x1]
        %v289 = vld [vmem:[%s155 + $0xf] sm:$0x1]
        %v298 = vrot.slane %v283, 7
        %v299 = vsel %vm196, %v298, %v282
        %v300 = vrot.slane %v284, 6
        %v301 = vsel %vm199, %v300, %v299
        %v302 = vrot.slane %v285, 5
        %v303 = vsel %vm202, %v302, %v301
        %v304 = vrot.slane %v286, 4
        %v305 = vsel %vm205, %v304, %v303
        %v306 = vrot.slane %v287, 3
        %v307 = vsel %vm208, %v306, %v305
        %v308 = vrot.slane %v288, 2
        %v309 = vsel %vm211, %v308, %v307
        %v310 = vrot.slane %v289, 1
        %v311 = vsel %vm214, %v310, %v309
        %312 = vrot.lane.b32.xlu0 %v311, 2
        %v313 = vpop.permute.xlu0 %312
        %v315 = vsel %vm219, 0.0, %v313
        %v316 = vsel %vm219, %v313, 0.0
        %s317 = sld [smem:[#allocation2 + $0x5]]
        %v318 = vstv %s317
        %v319 = vmul.f32 %v318, %v315
        %v320 = vadd.f32 %v281, %v319
        %s321 = sld [smem:[#allocation2 + $0x6]]
        %v322 = vstv %s321
        %v323 = vmul.f32 %v322, %v315
        %v324 = vmul.f32 %v322, %v316
        %327 = vrot.lane.b32.xlu0 %v323, 127
        %v328 = vpop.permute.xlu0 %327
        %329 = vrot.lane.b32.xlu0 %v324, 127
        %v330 = vpop.permute.xlu0 %329
        %v331 = vsel %vm236, %v328, %v330
        %v333 = vadd.f32 %v320, %v331
        %s334 = sld [smem:[#allocation2 + $0x7]]
        %v335 = vstv %s334
        %v336 = vmul.f32 %v335, %v315
        %v337 = vmul.f32 %v335, %v316
        %340 = vrot.lane.b32.xlu0 %v336, 126
        %v341 = vpop.permute.xlu0 %340
        %342 = vrot.lane.b32.xlu0 %v337, 126
        %v343 = vpop.permute.xlu0 %342
        %v344 = vsel %vm250, %v341, %v343
        %v346 = vadd.f32 %v333, %v344
        %s347 = sld [smem:[#allocation2 + $0x8]]
        %v348 = vstv %s347
        %v349 = vmul.f32 %v348, %v315
        %v350 = vmul.f32 %v348, %v316
        %353 = vrot.lane.b32.xlu0 %v349, 125
        %v354 = vpop.permute.xlu0 %353
        %355 = vrot.lane.b32.xlu0 %v350, 125
        %v356 = vpop.permute.xlu0 %355
        %v357 = vsel %vm264, %v354, %v356
        %v359 = vadd.f32 %v346, %v357
        %s360 = sld [smem:[#allocation2 + $0x9]]
        %v361 = vstv %s360
        %v362 = vmul.f32 %v361, %v315
        %v363 = vmul.f32 %v361, %v316
        %366 = vrot.lane.b32.xlu0 %v362, 124
        %v367 = vpop.permute.xlu0 %366
        %368 = vrot.lane.b32.xlu0 %v363, 124
        %v369 = vpop.permute.xlu0 %368
        %v370 = vsel %vm278, %v367, %v369
        %v372 = vadd.f32 %v359, %v370
        %v373 = vsub.f32 0.0, %v372
        %v374 = vmul.f32 %v373, 1.442695
        %v375 = vpow.pop %v374
        %v376 = vadd.f32 %v375, 1.0
        %v377 = vrcp.pop %v376
        %v378 = vmul.f32 %v376, %v377
        %v379 = vsub.f32 1.0, %v378
        %v380 = vmul.f32 %v377, %v379
        %v381 = vadd.f32 %v377, %v380
        %vm382 = vweird.f32 %v376
        %vm383 = vweird.f32 %v377
        %vm384 = vmor %vm382, %vm383
        %v385 = vsel %vm384, %v377, %v381
        %v386 = vand.u32 2147483647, %v376
        %vm387 = vcmp.eq.f32.partialorder %v386, 8.507059e+37
        %v388 = vand.u32 %v376, 2147483648
        %v389 = vor.u32 1.1754944e-38, %v388
        %v390 = vsel %vm387, %v389, %v385
        %v391 = vmul.f32 1.0, %v390
        %392 = vst [vmem:[%s177] sm:$0xff] %v391
        %s393 = sand.u32 %s75, 1
        %s394 = scalar_lea.sflag [#allocation4], %s393
        %s395 = sand.u32 %s75, 1
        %s396 = smul.addr %s395, 8
        %s397 = scalar_lea.vmem [#allocation7], %s396
        // Predicated region
        $region37: #{tpu_custom_call.1} parent=27 // pred_check
          %p398 = pneg %p85
        $region38: #{tpu_custom_call.1} parent=27 // pred_check_branch
          %400 = sbr.rel (%p398) target = $region40
        $region39: #{tpu_custom_call.1} parent=27 // pred_region
          %402 = vsyncadd %s394, 0
          %s403 = smul.addr %s20, 8
          %s404 = scalar_lea.hbm %s2, %s403
          %s406 = sshll.u32 %s397, 4
          %s407 = int_to_ptr.vmem [resolvable:$true] %s406
          %s408 = sshll.u32 %s404, 4
          %s409 = int_to_ptr.hbm [resolvable:$true] %s408
          %411 = dma.vmem_to_hbm [thread:$0]  %s407, 128, %s409, %s394
        $region40: #{tpu_custom_call.1} parent=27 // pred_fallthru
          _
      $region28: #{tpu_custom_call.1} parent=5 // pred_fallthru
        _
      %p412 = scmp.le.s32.totalorder 2, %s15
      // Predicated region
      $region41: #{tpu_custom_call.1} parent=5 // pred_check
        %p413 = pneg %p412
      $region42: #{tpu_custom_call.1} parent=5 // pred_check_branch
        %415 = sbr.rel (%p413) target = $region44
      $region43: #{tpu_custom_call.1} parent=5 // pred_region
        %s416 = ssub.s32 %s15, 2
        // Predicated region
        $region45: #{tpu_custom_call.1} parent=43 // pred_check
          %p417 = pneg %p91
        $region46: #{tpu_custom_call.1} parent=43 // pred_check_branch
          %419 = sbr.rel (%p417) target = $region48
        $region47: #{tpu_custom_call.1} parent=43 // pred_region
          %s420 = sand.u32 %s76, 1
          %s421 = scalar_lea.sflag [#allocation4], %s420
          %s422 = sand.u32 %s76, 1
          %s423 = smul.addr %s422, 8
          %s424 = scalar_lea.vmem [#allocation7], %s423
          %426 = dma.done %s421, 128
        $region48: #{tpu_custom_call.1} parent=43 // pred_fallthru
          _
      $region44: #{tpu_custom_call.1} parent=5 // pred_fallthru
        _
    $region6: #{tpu_custom_call.1} parent=1 // loop_footer
      %s19 = sadd.s32 1, %s15
    $region7: #{tpu_custom_call.1} parent=1 // loop_footer_branch
      %14 = sbr.rel target = $region3
    $region8: #{tpu_custom_call.1} parent=1 // loop_exit
      _
    %427 = vsyncpa [#allocation3], 1
    %s428 = scalar_lea.sflag [#allocation3], 1
    %429 = vsyncpa %s428, 1
    %430 = vsyncpa [#allocation4], 1
    %s431 = scalar_lea.sflag [#allocation4], 1
    %432 = vsyncpa %s431, 1
    %433 = vsyncpa [#allocation5], 1
    %s434 = scalar_lea.sflag [#allocation5], 1
    %435 = vsyncpa %s434, 1

</llo_original>
